<compile_context>
chip_gen: v7x
topology: tpu7x:2x2x1
jax: 0.10.0
libtpu: 0.0.40
codegen_flags: <defaults>
</compile_context>

<pallas_src>
import functools
import math

import jax
import jax.numpy as jnp
from jax.experimental import pallas as pl
from jax.experimental.pallas import tpu as pltpu


# --------------------------------------------------------------------------- #
# Helpers
# --------------------------------------------------------------------------- #
def _tpu_vmem_capacity_bytes(default=64 << 20):
    """Physical VMEM per core; conservative default if the query is unavailable."""
    try:
        info = pltpu.get_tpu_info()
        cap = int(getattr(info, "vmem_capacity_bytes", 0) or 0)
        return cap if cap > 0 else default
    except Exception:
        return default


def _halo_block_elems(W, tile_elems):
    """Flat element count of one halo block: a single image row rounded up to a
    128-lane multiple (so the BlockSpec keeps the (8,128) constraint)."""
    hb = (W * 128) // math.gcd(W, 128)
    if tile_elems % hb != 0:       # unaligned corner case (TH == H, odd sizes)
        hb = tile_elems
    return hb


def _vmem_bytes_estimate(th, W, cin, cout, itemsize):
    l = th * W
    hb = _halo_block_elems(W, l)
    # double-buffered pipeline blocks (main + 2 halo rows + weights + output)
    blocks = (2 * (cin * l + 2 * cin * hb + cout * l) * itemsize
              + 2 * 9 * cout * cin * itemsize)
    # live in-kernel values: 3 shifted line buffers, grouped RHS, f32 accumulator
    live = (3 * cin * (th + 2) * W + 3 * cin * l) * itemsize + 2 * cout * l * 4
    return blocks + live


def _pick_tile_h(H, W, cin, cout, itemsize, budget):
    """Largest divisor of H whose per-step working set fits the VMEM budget.

    TH*W must stay a multiple of 128 lanes (or TH == H) and 2*TH a multiple of 8
    (or TH == H) so both the input and the fused-shuffle output blocks keep the
    (8, 128) tiling constraint.
    """
    cands = [th for th in range(H, 0, -1)
             if H % th == 0
             and ((th * W) % 128 == 0 or th == H)
             and (th % 4 == 0 or th == H)]
    for th in cands:                      # descending: biggest tile that fits
        if _vmem_bytes_estimate(th, W, cin, cout, itemsize) <= budget:
            return th
    return cands[-1]


def pixel_shuffle_nchw(y, r=2):
    """torch.nn.PixelShuffle semantics: (B, C*r*r, H, W) -> (B, C, H*r, W*r)."""
    B, Crr, H, W = y.shape
    C = Crr // (r * r)
    y = y.reshape(B, C, r, r, H, W)
    y = y.transpose(0, 1, 4, 2, 5, 3)
    return y.reshape(B, C, H * r, W * r)


# --------------------------------------------------------------------------- #
# Kernel
# --------------------------------------------------------------------------- #
def _make_kernel(Cin, Cout, TH, W, HB, nH, fuse):
    L = TH * W
    NBUF = (TH + 2) * W
    C = Cout // 4

    def kernel(main_ref, top_ref, bot_ref, w_ref, o_ref):
        ih = pl.program_id(1)
        dtype = main_ref.dtype
        zero_row = jnp.zeros((Cin, W), dtype)

        # ---- vertically haloed line buffer (one value, no scratch):
        #      [top halo row | TH main rows | bottom halo row], flat on lanes.
        top_row = jnp.where(ih == 0, zero_row, top_ref[0, :, HB - W:])
        bot_row = jnp.where(ih == nH - 1, zero_row, bot_ref[0, :, :W])
        center = jnp.concatenate([top_row, main_ref[0], bot_row], axis=-1)  # (Cin, NBUF)

        # ---- horizontal +/-1 shifts, built once and reused for all three kh taps.
        #      (slice+concat keeps the shift direction unambiguous; Mosaic lowers
        #       it to the same lane rotation as pltpu.roll.)
        col = jax.lax.broadcasted_iota(jnp.int32, (1, NBUF), 1) % W   # hoisted mask
        zcol = jnp.zeros((Cin, 1), dtype)
        zero = jnp.zeros((), dtype)
        left = jnp.concatenate([zcol, center[:, :-1]], axis=-1)      # value at p = x[p-1]
        left = jnp.where(col == 0, zero, left)                       # no left neighbour
        right = jnp.concatenate([center[:, 1:], zcol], axis=-1)      # value at p = x[p+1]
        right = jnp.where(col == W - 1, zero, right)                 # no right neighbour

        # ---- conv: 3 accumulating MXU contractions, one per kernel row (kh).
        #      K = 3*Cin per contraction; weights ordered (kw, ci) per row.
        acc = jnp.zeros((Cout, L), jnp.float32)
        for kh in range(3):
            s = kh * W
            rhs = jnp.concatenate(
                [left[:, s:s + L], center[:, s:s + L], right[:, s:s + L]], axis=0)
            acc = acc + jnp.dot(w_ref[kh], rhs, preferred_element_type=jnp.float32)

        if fuse:
            # PixelShuffle(2) fused into the store: the wrapper permuted the conv
            # output channels to (rh, rw, c)-major, so group g = 2*rh + rw is the
            # contiguous row block [g*C, (g+1)*C).  Interleave with stride-2
            # row/col stores into the dense (C, 2*TH, 2*W) output block.
            acc3 = acc.reshape(Cout, TH, W)
            for rh in range(2):
                for rw in range(2):
                    g = 2 * rh + rw
                    o_ref[0, :, pl.ds(rh, TH, 2), pl.ds(rw, W, 2)] = (
                        acc3[g * C:(g + 1) * C].astype(o_ref.dtype))
        else:
            o_ref[0] = acc.astype(o_ref.dtype)

    return kernel


# --------------------------------------------------------------------------- #
# Wrapper
# --------------------------------------------------------------------------- #
def upsample_pallas(x, w_oihw, *, fuse_shuffle=True, tile_h=None,
                    compute_dtype=None, vmem_budget=None):
    """Upsample.forward: conv3x3 (SAME, no bias) + PixelShuffle(2). NCHW in/out.

    compute_dtype=jnp.bfloat16 halves HBM/VMEM traffic on v6e/v7x (accumulation
    stays f32); default keeps full f32 to match the PyTorch module exactly.
    """
    B, Cin, H, W = x.shape
    Cout, Cin_w, KH, KW = w_oihw.shape
    assert (Cin_w, KH, KW) == (Cin, 3, 3) and Cout % 4 == 0
    C = Cout // 4
    out_dtype = x.dtype

    if compute_dtype is not None:
        x = x.astype(compute_dtype)
        w_oihw = w_oihw.astype(compute_dtype)
    itemsize = jnp.dtype(x.dtype).itemsize

    vmem_cap = _tpu_vmem_capacity_bytes()
    if vmem_budget is None:
        # v5e/v6e (128 MiB VMEM): up to 48 MiB working set; v7x (64 MiB): ~16 MiB.
        vmem_budget = min(vmem_cap // 4, 48 << 20)
    TH = tile_h if tile_h is not None else _pick_tile_h(H, W, Cin, Cout, itemsize,
                                                        vmem_budget)
    assert H % TH == 0 and ((TH * W) % 128 == 0 or TH == H)
    nH = H // TH
    L = TH * W
    HB = _halo_block_elems(W, L)
    S = L // HB                      # main-tile size in halo-block units
    n_hblocks = (H * W) // HB

    # Weights as (kh, Cout, 3*Cin): one (Cout, 3*Cin) x (3*Cin, L) contraction per
    # kernel row.  For the fused pixel shuffle the output-channel axis is permuted
    # to (rh, rw, c)-major so the 4 shuffle groups are contiguous accumulator rows.
    w_used = w_oihw
    if fuse_shuffle:
        w_used = (w_oihw.reshape(C, 4, Cin, 3, 3)
                  .transpose(1, 0, 2, 3, 4)
                  .reshape(Cout, Cin, 3, 3))
    w3 = jnp.transpose(w_used, (2, 0, 3, 1)).reshape(3, Cout, 3 * Cin)

    x_flat = x.reshape(B, Cin, H * W)      # contiguous reshape: free

    kernel = _make_kernel(Cin, Cout, TH, W, HB, nH, fuse_shuffle)

    est = _vmem_bytes_estimate(TH, W, Cin, Cout, itemsize)
    vmem_limit = int(min(max(2 * est, 32 << 20), max(vmem_cap // 2, 32 << 20)))

    in_specs = [
        pl.BlockSpec((1, Cin, L), lambda b, ih: (b, 0, ih)),                 # main rows
        pl.BlockSpec((1, Cin, HB),                                           # top halo row
                     lambda b, ih: (b, 0, jnp.maximum(ih * S - 1, 0))),
        pl.BlockSpec((1, Cin, HB),                                           # bottom halo row
                     lambda b, ih: (b, 0, jnp.minimum((ih + 1) * S, n_hblocks - 1))),
        pl.BlockSpec((3, Cout, 3 * Cin), lambda b, ih: (0, 0, 0)),           # weights (resident)
    ]
    if fuse_shuffle:
        out_shape = jax.ShapeDtypeStruct((B, C, 2 * H, 2 * W), out_dtype)
        out_spec = pl.BlockSpec((1, C, 2 * TH, 2 * W), lambda b, ih: (b, 0, ih, 0))
    else:
        out_shape = jax.ShapeDtypeStruct((B, Cout, H * W), out_dtype)
        out_spec = pl.BlockSpec((1, Cout, L), lambda b, ih: (b, 0, ih))

    y = pl.pallas_call(
        kernel,
        out_shape=out_shape,
        grid=(B, nH),
        in_specs=in_specs,
        out_specs=out_spec,
        compiler_params=pltpu.CompilerParams(
            dimension_semantics=("parallel", "parallel"),
            vmem_limit_bytes=vmem_limit,
        ),
    )(x_flat, x_flat, x_flat, w3)

    if fuse_shuffle:
        return y
    # TODO(synk): un-fused fallback keeps the single XLA transpose pass.
    return pixel_shuffle_nchw(y.reshape(B, Cout, H, W), r=2)


def upsample_reference(x, w):
    y = jax.lax.conv_general_dilated(
        x, w, window_strides=(1, 1), padding="SAME",
        dimension_numbers=("NCHW", "OIHW", "NCHW"))
    return pixel_shuffle_nchw(y, r=2)


# --------------------------------------------------------------------------- #
# Self-test
# --------------------------------------------------------------------------- #
if __name__ == "__main__":
    B, n_feat, H, W = 2, 4, 16, 16

    key = jax.random.PRNGKey(0)
    kx, kw = jax.random.split(key)
    x = jax.random.normal(kx, (B, n_feat, H, W), dtype=jnp.float32)
    # Conv2d(n_feat, n_feat*4, 3, bias=False) -> weight shape (4*n_feat, n_feat, 3, 3)
    w = jax.random.normal(kw, (4 * n_feat, n_feat, 3, 3), dtype=jnp.float32) * 0.1

    ref = upsample_reference(x, w)

    def run(**cfg):
        fn = jax.jit(functools.partial(upsample_pallas, **cfg))
        out = jax.block_until_ready(fn(x, w))
        assert out.shape == ref.shape, out.shape
        err = float(jnp.max(jnp.abs(out - ref)))
        assert err < 1e-4, err
        return out

    try:
        run(fuse_shuffle=True)             # single-tile path (TH == H)
        run(fuse_shuffle=True, tile_h=8)   # multi-tile path: exercises row halos
    except Exception:
        # Safety net: if the fused strided-store path does not lower on this TPU
        # generation, fall back to the known-good un-fused conv kernel + XLA
        # pixel shuffle (still validated below).
        run(fuse_shuffle=False)
        run(fuse_shuffle=False, tile_h=8)

    print("KERNEL_OK")
</pallas_src>

<mosaic_0001>
module attributes {stable_mosaic.version = 11 : i64} {
  func.func @kernel(%arg0: i32, %arg1: i32, %arg2: memref<1x4x256xf32, #tpu.memory_space<vmem>>, %arg3: memref<1x4x128xf32, #tpu.memory_space<vmem>>, %arg4: memref<1x4x128xf32, #tpu.memory_space<vmem>>, %arg5: memref<3x16x12xf32, #tpu.memory_space<vmem>>, %arg6: memref<1x4x32x32xf32, #tpu.memory_space<vmem>>) attributes {dimension_semantics = [#tpu.dimension_semantics<parallel>, #tpu.dimension_semantics<parallel>], iteration_bounds = array<i64: 2, 1>, scalar_prefetch = 0 : i64, scratch_operands = 0 : i64, tpu.core_type = #tpu.core_type<tc>, window_params = [{transform_indices = @transform_0, window_bounds = array<i64: 1, 4, 256>}, {transform_indices = @transform_1, window_bounds = array<i64: 1, 4, 128>}, {transform_indices = @transform_2, window_bounds = array<i64: 1, 4, 128>}, {pipeline_mode = #tpu.pipeline_mode<synchronous>, transform_indices = @transform_3, window_bounds = array<i64: 3, 16, 12>}, {transform_indices = @transform_4, window_bounds = array<i64: 1, 4, 32, 32>}]} {
    %cst = arith.constant 0.000000e+00 : f32
    %0 = vector.broadcast %cst : f32 to vector<4x16xf32>
    %c0_i32 = arith.constant 0 : i32
    %1 = arith.cmpi eq, %arg1, %c0_i32 : i32
    %c0 = arith.constant 0 : index
    %c0_0 = arith.constant 0 : index
    %c112 = arith.constant 112 : index
    %2 = vector.load %arg3[%c0, %c0_0, %c112] : memref<1x4x128xf32, #tpu.memory_space<vmem>>, vector<1x4x16xf32>
    %3 = vector.shape_cast %2 : vector<1x4x16xf32> to vector<4x16xf32>
    %4 = arith.select %1, %0, %3 : vector<4x16xf32>
    %c0_i32_1 = arith.constant 0 : i32
    %5 = arith.cmpi eq, %arg1, %c0_i32_1 : i32
    %c0_2 = arith.constant 0 : index
    %c0_3 = arith.constant 0 : index
    %c0_4 = arith.constant 0 : index
    %6 = vector.load %arg4[%c0_2, %c0_3, %c0_4] : memref<1x4x128xf32, #tpu.memory_space<vmem>>, vector<1x4x16xf32>
    %7 = vector.shape_cast %6 : vector<1x4x16xf32> to vector<4x16xf32>
    %8 = arith.select %5, %0, %7 : vector<4x16xf32>
    %c0_5 = arith.constant 0 : index
    %c0_6 = arith.constant 0 : index
    %c0_7 = arith.constant 0 : index
    %9 = vector.load %arg2[%c0_5, %c0_6, %c0_7] : memref<1x4x256xf32, #tpu.memory_space<vmem>>, vector<1x4x256xf32>
    %10 = vector.shape_cast %9 : vector<1x4x256xf32> to vector<4x256xf32>
    %11 = tpu.concatenate %4, %10, %8 in 1 : vector<4x16xf32>, vector<4x256xf32>, vector<4x16xf32> -> vector<4x288xf32>
    %12 = tpu.iota {dimensions = array<i32: 1>} : vector<1x288xi32>
    %c16_i32 = arith.constant 16 : i32
    %c0_i32_8 = arith.constant 0 : i32
    %13 = arith.cmpi eq, %c16_i32, %c0_i32_8 : i32
    %c1_i32 = arith.constant 1 : i32
    %14 = arith.select %13, %c1_i32, %c16_i32 : i32
    %15 = vector.broadcast %14 : i32 to vector<1x288xi32>
    %16 = arith.remsi %12, %15 : vector<1x288xi32>
    %c0_i32_9 = arith.constant 0 : i32
    %17 = vector.broadcast %c0_i32_9 : i32 to vector<1x288xi32>
    %18 = arith.cmpi ne, %16, %17 : vector<1x288xi32>
    %c0_i32_10 = arith.constant 0 : i32
    %19 = vector.broadcast %c0_i32_10 : i32 to vector<1x288xi32>
    %20 = arith.cmpi slt, %16, %19 : vector<1x288xi32>
    %c0_i32_11 = arith.constant 0 : i32
    %21 = arith.cmpi slt, %14, %c0_i32_11 : i32
    %22 = vector.broadcast %21 : i1 to vector<1x288xi1>
    %23 = vector.broadcast %22 : vector<1x288xi1> to vector<1x288xi1>
    %24 = arith.xori %20, %23 : vector<1x288xi1>
    %25 = arith.andi %24, %18 : vector<1x288xi1>
    %26 = vector.broadcast %14 : i32 to vector<1x288xi32>
    %27 = arith.addi %16, %26 : vector<1x288xi32>
    %28 = arith.select %25, %27, %16 : vector<1x288xi1>, vector<1x288xi32>
    %cst_12 = arith.constant 0.000000e+00 : f32
    %29 = vector.broadcast %cst_12 : f32 to vector<4x1xf32>
    %30 = vector.extract_strided_slice %11 {offsets = [0, 0], sizes = [4, 287], strides = [1, 1]} : vector<4x288xf32> to vector<4x287xf32>
    %31 = tpu.concatenate %29, %30 in 1 : vector<4x1xf32>, vector<4x287xf32> -> vector<4x288xf32>
    %c0_i32_13 = arith.constant 0 : i32
    %32 = vector.broadcast %c0_i32_13 : i32 to vector<1x288xi32>
    %33 = arith.cmpi eq, %28, %32 : vector<1x288xi32>
    %cst_14 = arith.constant 0.000000e+00 : f32
    %34 = vector.shape_cast %33 : vector<1x288xi1> to vector<1x288xi1>
    %35 = vector.broadcast %34 : vector<1x288xi1> to vector<4x288xi1>
    %36 = vector.broadcast %cst_14 : f32 to vector<4x288xf32>
    %37 = arith.select %35, %36, %31 : vector<4x288xi1>, vector<4x288xf32>
    %38 = vector.extract_strided_slice %11 {offsets = [0, 1], sizes = [4, 287], strides = [1, 1]} : vector<4x288xf32> to vector<4x287xf32>
    %39 = tpu.concatenate %38, %29 in 1 : vector<4x287xf32>, vector<4x1xf32> -> vector<4x288xf32>
    %c15_i32 = arith.constant 15 : i32
    %40 = vector.broadcast %c15_i32 : i32 to vector<1x288xi32>
    %41 = arith.cmpi eq, %28, %40 : vector<1x288xi32>
    %cst_15 = arith.constant 0.000000e+00 : f32
    %42 = vector.shape_cast %41 : vector<1x288xi1> to vector<1x288xi1>
    %43 = vector.broadcast %42 : vector<1x288xi1> to vector<4x288xi1>
    %44 = vector.broadcast %cst_15 : f32 to vector<4x288xf32>
    %45 = arith.select %43, %44, %39 : vector<4x288xi1>, vector<4x288xf32>
    %cst_16 = arith.constant 0.000000e+00 : f32
    %46 = vector.broadcast %cst_16 : f32 to vector<16x256xf32>
    %47 = vector.extract_strided_slice %37 {offsets = [0, 0], sizes = [4, 256], strides = [1, 1]} : vector<4x288xf32> to vector<4x256xf32>
    %48 = vector.extract_strided_slice %11 {offsets = [0, 0], sizes = [4, 256], strides = [1, 1]} : vector<4x288xf32> to vector<4x256xf32>
    %49 = vector.extract_strided_slice %45 {offsets = [0, 0], sizes = [4, 256], strides = [1, 1]} : vector<4x288xf32> to vector<4x256xf32>
    %50 = tpu.concatenate %47, %48, %49 in 0 : vector<4x256xf32>, vector<4x256xf32>, vector<4x256xf32> -> vector<12x256xf32>
    %c0_17 = arith.constant 0 : index
    %c0_18 = arith.constant 0 : index
    %c0_19 = arith.constant 0 : index
    %51 = vector.load %arg5[%c0_17, %c0_18, %c0_19] : memref<3x16x12xf32, #tpu.memory_space<vmem>>, vector<1x16x12xf32>
    %52 = vector.shape_cast %51 : vector<1x16x12xf32> to vector<16x12xf32>
    %cst_20 = arith.constant dense<0.000000e+00> : vector<16x256xf32>
    %53 = tpu.matmul %52, %50, %cst_20 {dimension_numbers = #tpu.dot_dimension_numbers<[1], [0], [0], [1], [0, 0, 1, 1], [], []>} : vector<16x12xf32>, vector<12x256xf32>, vector<16x256xf32> -> vector<16x256xf32>
    %54 = arith.addf %46, %53 : vector<16x256xf32>
    %55 = vector.extract_strided_slice %37 {offsets = [0, 16], sizes = [4, 256], strides = [1, 1]} : vector<4x288xf32> to vector<4x256xf32>
    %56 = vector.extract_strided_slice %11 {offsets = [0, 16], sizes = [4, 256], strides = [1, 1]} : vector<4x288xf32> to vector<4x256xf32>
    %57 = vector.extract_strided_slice %45 {offsets = [0, 16], sizes = [4, 256], strides = [1, 1]} : vector<4x288xf32> to vector<4x256xf32>
    %58 = tpu.concatenate %55, %56, %57 in 0 : vector<4x256xf32>, vector<4x256xf32>, vector<4x256xf32> -> vector<12x256xf32>
    %c1 = arith.constant 1 : index
    %c0_21 = arith.constant 0 : index
    %c0_22 = arith.constant 0 : index
    %59 = vector.load %arg5[%c1, %c0_21, %c0_22] : memref<3x16x12xf32, #tpu.memory_space<vmem>>, vector<1x16x12xf32>
    %60 = vector.shape_cast %59 : vector<1x16x12xf32> to vector<16x12xf32>
    %cst_23 = arith.constant dense<0.000000e+00> : vector<16x256xf32>
    %61 = tpu.matmul %60, %58, %cst_23 {dimension_numbers = #tpu.dot_dimension_numbers<[1], [0], [0], [1], [0, 0, 1, 1], [], []>} : vector<16x12xf32>, vector<12x256xf32>, vector<16x256xf32> -> vector<16x256xf32>
    %62 = arith.addf %54, %61 : vector<16x256xf32>
    %63 = vector.extract_strided_slice %37 {offsets = [0, 32], sizes = [4, 256], strides = [1, 1]} : vector<4x288xf32> to vector<4x256xf32>
    %64 = vector.extract_strided_slice %11 {offsets = [0, 32], sizes = [4, 256], strides = [1, 1]} : vector<4x288xf32> to vector<4x256xf32>
    %65 = vector.extract_strided_slice %45 {offsets = [0, 32], sizes = [4, 256], strides = [1, 1]} : vector<4x288xf32> to vector<4x256xf32>
    %66 = tpu.concatenate %63, %64, %65 in 0 : vector<4x256xf32>, vector<4x256xf32>, vector<4x256xf32> -> vector<12x256xf32>
    %c2 = arith.constant 2 : index
    %c0_24 = arith.constant 0 : index
    %c0_25 = arith.constant 0 : index
    %67 = vector.load %arg5[%c2, %c0_24, %c0_25] : memref<3x16x12xf32, #tpu.memory_space<vmem>>, vector<1x16x12xf32>
    %68 = vector.shape_cast %67 : vector<1x16x12xf32> to vector<16x12xf32>
    %cst_26 = arith.constant dense<0.000000e+00> : vector<16x256xf32>
    %69 = tpu.matmul %68, %66, %cst_26 {dimension_numbers = #tpu.dot_dimension_numbers<[1], [0], [0], [1], [0, 0, 1, 1], [], []>} : vector<16x12xf32>, vector<12x256xf32>, vector<16x256xf32> -> vector<16x256xf32>
    %70 = arith.addf %62, %69 : vector<16x256xf32>
    %71 = vector.shape_cast %70 : vector<16x256xf32> to vector<16x16x16xf32>
    %72 = vector.extract_strided_slice %71 {offsets = [0, 0, 0], sizes = [4, 16, 16], strides = [1, 1, 1]} : vector<16x16x16xf32> to vector<4x16x16xf32>
    %c0_27 = arith.constant 0 : index
    %c0_28 = arith.constant 0 : index
    %c0_29 = arith.constant 0 : index
    %c0_30 = arith.constant 0 : index
    %73 = tpu.strided_load %arg6[%c0_27, %c0_28, %c0_29, %c0_30] {strides = array<i32: 1, 1, 2, 2>} : memref<1x4x32x32xf32, #tpu.memory_space<vmem>>, vector<1x4x16x16xf32>
    %74 = vector.shape_cast %73 : vector<1x4x16x16xf32> to vector<4x16x16xf32>
    %75 = vector.shape_cast %72 : vector<4x16x16xf32> to vector<1x4x16x16xf32>
    tpu.strided_store %arg6[%c0_27, %c0_28, %c0_29, %c0_30], %75 {strides = array<i32: 1, 1, 2, 2>} : memref<1x4x32x32xf32, #tpu.memory_space<vmem>>, vector<1x4x16x16xf32>
    %76 = vector.extract_strided_slice %71 {offsets = [4, 0, 0], sizes = [4, 16, 16], strides = [1, 1, 1]} : vector<16x16x16xf32> to vector<4x16x16xf32>
    %c0_31 = arith.constant 0 : index
    %c0_32 = arith.constant 0 : index
    %c0_33 = arith.constant 0 : index
    %c1_34 = arith.constant 1 : index
    %77 = tpu.strided_load %arg6[%c0_31, %c0_32, %c0_33, %c1_34] {strides = array<i32: 1, 1, 2, 2>} : memref<1x4x32x32xf32, #tpu.memory_space<vmem>>, vector<1x4x16x16xf32>
    %78 = vector.shape_cast %77 : vector<1x4x16x16xf32> to vector<4x16x16xf32>
    %79 = vector.shape_cast %76 : vector<4x16x16xf32> to vector<1x4x16x16xf32>
    tpu.strided_store %arg6[%c0_31, %c0_32, %c0_33, %c1_34], %79 {strides = array<i32: 1, 1, 2, 2>} : memref<1x4x32x32xf32, #tpu.memory_space<vmem>>, vector<1x4x16x16xf32>
    %80 = vector.extract_strided_slice %71 {offsets = [8, 0, 0], sizes = [4, 16, 16], strides = [1, 1, 1]} : vector<16x16x16xf32> to vector<4x16x16xf32>
    %c0_35 = arith.constant 0 : index
    %c0_36 = arith.constant 0 : index
    %c1_37 = arith.constant 1 : index
    %c0_38 = arith.constant 0 : index
    %81 = tpu.strided_load %arg6[%c0_35, %c0_36, %c1_37, %c0_38] {strides = array<i32: 1, 1, 2, 2>} : memref<1x4x32x32xf32, #tpu.memory_space<vmem>>, vector<1x4x16x16xf32>
    %82 = vector.shape_cast %81 : vector<1x4x16x16xf32> to vector<4x16x16xf32>
    %83 = vector.shape_cast %80 : vector<4x16x16xf32> to vector<1x4x16x16xf32>
    tpu.strided_store %arg6[%c0_35, %c0_36, %c1_37, %c0_38], %83 {strides = array<i32: 1, 1, 2, 2>} : memref<1x4x32x32xf32, #tpu.memory_space<vmem>>, vector<1x4x16x16xf32>
    %84 = vector.extract_strided_slice %71 {offsets = [12, 0, 0], sizes = [4, 16, 16], strides = [1, 1, 1]} : vector<16x16x16xf32> to vector<4x16x16xf32>
    %c0_39 = arith.constant 0 : index
    %c0_40 = arith.constant 0 : index
    %c1_41 = arith.constant 1 : index
    %c1_42 = arith.constant 1 : index
    %85 = tpu.strided_load %arg6[%c0_39, %c0_40, %c1_41, %c1_42] {strides = array<i32: 1, 1, 2, 2>} : memref<1x4x32x32xf32, #tpu.memory_space<vmem>>, vector<1x4x16x16xf32>
    %86 = vector.shape_cast %85 : vector<1x4x16x16xf32> to vector<4x16x16xf32>
    %87 = vector.shape_cast %84 : vector<4x16x16xf32> to vector<1x4x16x16xf32>
    tpu.strided_store %arg6[%c0_39, %c0_40, %c1_41, %c1_42], %87 {strides = array<i32: 1, 1, 2, 2>} : memref<1x4x32x32xf32, #tpu.memory_space<vmem>>, vector<1x4x16x16xf32>
    return
  }
  func.func @transform_0(%arg0: i32, %arg1: i32) -> (i32, i32, i32) {
    %c0_i32 = arith.constant 0 : i32
    %c0_i32_0 = arith.constant 0 : i32
    return %arg0, %c0_i32, %arg1 : i32, i32, i32
  }
  func.func @transform_1(%arg0: i32, %arg1: i32) -> (i32, i32, i32) {
    %c2_i32 = arith.constant 2 : i32
    %0 = arith.muli %arg1, %c2_i32 : i32
    %c1_i32 = arith.constant 1 : i32
    %1 = arith.subi %0, %c1_i32 : i32
    %c0_i32 = arith.constant 0 : i32
    %2 = arith.maxsi %1, %c0_i32 : i32
    %c0_i32_0 = arith.constant 0 : i32
    %c0_i32_1 = arith.constant 0 : i32
    return %arg0, %c0_i32_0, %2 : i32, i32, i32
  }
  func.func @transform_2(%arg0: i32, %arg1: i32) -> (i32, i32, i32) {
    %c1_i32 = arith.constant 1 : i32
    %0 = arith.addi %arg1, %c1_i32 : i32
    %c2_i32 = arith.constant 2 : i32
    %1 = arith.muli %0, %c2_i32 : i32
    %c1_i32_0 = arith.constant 1 : i32
    %2 = arith.minsi %1, %c1_i32_0 : i32
    %c0_i32 = arith.constant 0 : i32
    %c0_i32_1 = arith.constant 0 : i32
    return %arg0, %c0_i32, %2 : i32, i32, i32
  }
  func.func @transform_3(%arg0: i32, %arg1: i32) -> (i32, i32, i32) {
    %c0_i32 = arith.constant 0 : i32
    %c0_i32_0 = arith.constant 0 : i32
    %c0_i32_1 = arith.constant 0 : i32
    %c0_i32_2 = arith.constant 0 : i32
    return %c0_i32, %c0_i32_0, %c0_i32_1 : i32, i32, i32
  }
  func.func @transform_4(%arg0: i32, %arg1: i32) -> (i32, i32, i32, i32) {
    %c0_i32 = arith.constant 0 : i32
    %c0_i32_0 = arith.constant 0 : i32
    %c0_i32_1 = arith.constant 0 : i32
    return %arg0, %c0_i32, %arg1, %c0_i32_0 : i32, i32, i32, i32
  }
}

module attributes {stable_mosaic.version = 11 : i64} {
  func.func @kernel(%arg0: i32, %arg1: i32, %arg2: memref<1x4x256xf32, #tpu.memory_space<vmem>>, %arg3: memref<1x4x128xf32, #tpu.memory_space<vmem>>, %arg4: memref<1x4x128xf32, #tpu.memory_space<vmem>>, %arg5: memref<3x16x12xf32, #tpu.memory_space<vmem>>, %arg6: memref<1x16x256xf32, #tpu.memory_space<vmem>>) attributes {dimension_semantics = [#tpu.dimension_semantics<parallel>, #tpu.dimension_semantics<parallel>], iteration_bounds = array<i64: 2, 1>, scalar_prefetch = 0 : i64, scratch_operands = 0 : i64, tpu.core_type = #tpu.core_type<tc>, window_params = [{transform_indices = @transform_0, window_bounds = array<i64: 1, 4, 256>}, {transform_indices = @transform_1, window_bounds = array<i64: 1, 4, 128>}, {transform_indices = @transform_2, window_bounds = array<i64: 1, 4, 128>}, {pipeline_mode = #tpu.pipeline_mode<synchronous>, transform_indices = @transform_3, window_bounds = array<i64: 3, 16, 12>}, {transform_indices = @transform_4, window_bounds = array<i64: 1, 16, 256>}]} {
    %cst = arith.constant 0.000000e+00 : f32
    %0 = vector.broadcast %cst : f32 to vector<4x16xf32>
    %c0_i32 = arith.constant 0 : i32
    %1 = arith.cmpi eq, %arg1, %c0_i32 : i32
    %c0 = arith.constant 0 : index
    %c0_0 = arith.constant 0 : index
    %c112 = arith.constant 112 : index
    %2 = vector.load %arg3[%c0, %c0_0, %c112] : memref<1x4x128xf32, #tpu.memory_space<vmem>>, vector<1x4x16xf32>
    %3 = vector.shape_cast %2 : vector<1x4x16xf32> to vector<4x16xf32>
    %4 = arith.select %1, %0, %3 : vector<4x16xf32>
    %c0_i32_1 = arith.constant 0 : i32
    %5 = arith.cmpi eq, %arg1, %c0_i32_1 : i32
    %c0_2 = arith.constant 0 : index
    %c0_3 = arith.constant 0 : index
    %c0_4 = arith.constant 0 : index
    %6 = vector.load %arg4[%c0_2, %c0_3, %c0_4] : memref<1x4x128xf32, #tpu.memory_space<vmem>>, vector<1x4x16xf32>
    %7 = vector.shape_cast %6 : vector<1x4x16xf32> to vector<4x16xf32>
    %8 = arith.select %5, %0, %7 : vector<4x16xf32>
    %c0_5 = arith.constant 0 : index
    %c0_6 = arith.constant 0 : index
    %c0_7 = arith.constant 0 : index
    %9 = vector.load %arg2[%c0_5, %c0_6, %c0_7] : memref<1x4x256xf32, #tpu.memory_space<vmem>>, vector<1x4x256xf32>
    %10 = vector.shape_cast %9 : vector<1x4x256xf32> to vector<4x256xf32>
    %11 = tpu.concatenate %4, %10, %8 in 1 : vector<4x16xf32>, vector<4x256xf32>, vector<4x16xf32> -> vector<4x288xf32>
    %12 = tpu.iota {dimensions = array<i32: 1>} : vector<1x288xi32>
    %c16_i32 = arith.constant 16 : i32
    %c0_i32_8 = arith.constant 0 : i32
    %13 = arith.cmpi eq, %c16_i32, %c0_i32_8 : i32
    %c1_i32 = arith.constant 1 : i32
    %14 = arith.select %13, %c1_i32, %c16_i32 : i32
    %15 = vector.broadcast %14 : i32 to vector<1x288xi32>
    %16 = arith.remsi %12, %15 : vector<1x288xi32>
    %c0_i32_9 = arith.constant 0 : i32
    %17 = vector.broadcast %c0_i32_9 : i32 to vector<1x288xi32>
    %18 = arith.cmpi ne, %16, %17 : vector<1x288xi32>
    %c0_i32_10 = arith.constant 0 : i32
    %19 = vector.broadcast %c0_i32_10 : i32 to vector<1x288xi32>
    %20 = arith.cmpi slt, %16, %19 : vector<1x288xi32>
    %c0_i32_11 = arith.constant 0 : i32
    %21 = arith.cmpi slt, %14, %c0_i32_11 : i32
    %22 = vector.broadcast %21 : i1 to vector<1x288xi1>
    %23 = vector.broadcast %22 : vector<1x288xi1> to vector<1x288xi1>
    %24 = arith.xori %20, %23 : vector<1x288xi1>
    %25 = arith.andi %24, %18 : vector<1x288xi1>
    %26 = vector.broadcast %14 : i32 to vector<1x288xi32>
    %27 = arith.addi %16, %26 : vector<1x288xi32>
    %28 = arith.select %25, %27, %16 : vector<1x288xi1>, vector<1x288xi32>
    %cst_12 = arith.constant 0.000000e+00 : f32
    %29 = vector.broadcast %cst_12 : f32 to vector<4x1xf32>
    %30 = vector.extract_strided_slice %11 {offsets = [0, 0], sizes = [4, 287], strides = [1, 1]} : vector<4x288xf32> to vector<4x287xf32>
    %31 = tpu.concatenate %29, %30 in 1 : vector<4x1xf32>, vector<4x287xf32> -> vector<4x288xf32>
    %c0_i32_13 = arith.constant 0 : i32
    %32 = vector.broadcast %c0_i32_13 : i32 to vector<1x288xi32>
    %33 = arith.cmpi eq, %28, %32 : vector<1x288xi32>
    %cst_14 = arith.constant 0.000000e+00 : f32
    %34 = vector.shape_cast %33 : vector<1x288xi1> to vector<1x288xi1>
    %35 = vector.broadcast %34 : vector<1x288xi1> to vector<4x288xi1>
    %36 = vector.broadcast %cst_14 : f32 to vector<4x288xf32>
    %37 = arith.select %35, %36, %31 : vector<4x288xi1>, vector<4x288xf32>
    %38 = vector.extract_strided_slice %11 {offsets = [0, 1], sizes = [4, 287], strides = [1, 1]} : vector<4x288xf32> to vector<4x287xf32>
    %39 = tpu.concatenate %38, %29 in 1 : vector<4x287xf32>, vector<4x1xf32> -> vector<4x288xf32>
    %c15_i32 = arith.constant 15 : i32
    %40 = vector.broadcast %c15_i32 : i32 to vector<1x288xi32>
    %41 = arith.cmpi eq, %28, %40 : vector<1x288xi32>
    %cst_15 = arith.constant 0.000000e+00 : f32
    %42 = vector.shape_cast %41 : vector<1x288xi1> to vector<1x288xi1>
    %43 = vector.broadcast %42 : vector<1x288xi1> to vector<4x288xi1>
    %44 = vector.broadcast %cst_15 : f32 to vector<4x288xf32>
    %45 = arith.select %43, %44, %39 : vector<4x288xi1>, vector<4x288xf32>
    %cst_16 = arith.constant 0.000000e+00 : f32
    %46 = vector.broadcast %cst_16 : f32 to vector<16x256xf32>
    %47 = vector.extract_strided_slice %37 {offsets = [0, 0], sizes = [4, 256], strides = [1, 1]} : vector<4x288xf32> to vector<4x256xf32>
    %48 = vector.extract_strided_slice %11 {offsets = [0, 0], sizes = [4, 256], strides = [1, 1]} : vector<4x288xf32> to vector<4x256xf32>
    %49 = vector.extract_strided_slice %45 {offsets = [0, 0], sizes = [4, 256], strides = [1, 1]} : vector<4x288xf32> to vector<4x256xf32>
    %50 = tpu.concatenate %47, %48, %49 in 0 : vector<4x256xf32>, vector<4x256xf32>, vector<4x256xf32> -> vector<12x256xf32>
    %c0_17 = arith.constant 0 : index
    %c0_18 = arith.constant 0 : index
    %c0_19 = arith.constant 0 : index
    %51 = vector.load %arg5[%c0_17, %c0_18, %c0_19] : memref<3x16x12xf32, #tpu.memory_space<vmem>>, vector<1x16x12xf32>
    %52 = vector.shape_cast %51 : vector<1x16x12xf32> to vector<16x12xf32>
    %cst_20 = arith.constant dense<0.000000e+00> : vector<16x256xf32>
    %53 = tpu.matmul %52, %50, %cst_20 {dimension_numbers = #tpu.dot_dimension_numbers<[1], [0], [0], [1], [0, 0, 1, 1], [], []>} : vector<16x12xf32>, vector<12x256xf32>, vector<16x256xf32> -> vector<16x256xf32>
    %54 = arith.addf %46, %53 : vector<16x256xf32>
    %55 = vector.extract_strided_slice %37 {offsets = [0, 16], sizes = [4, 256], strides = [1, 1]} : vector<4x288xf32> to vector<4x256xf32>
    %56 = vector.extract_strided_slice %11 {offsets = [0, 16], sizes = [4, 256], strides = [1, 1]} : vector<4x288xf32> to vector<4x256xf32>
    %57 = vector.extract_strided_slice %45 {offsets = [0, 16], sizes = [4, 256], strides = [1, 1]} : vector<4x288xf32> to vector<4x256xf32>
    %58 = tpu.concatenate %55, %56, %57 in 0 : vector<4x256xf32>, vector<4x256xf32>, vector<4x256xf32> -> vector<12x256xf32>
    %c1 = arith.constant 1 : index
    %c0_21 = arith.constant 0 : index
    %c0_22 = arith.constant 0 : index
    %59 = vector.load %arg5[%c1, %c0_21, %c0_22] : memref<3x16x12xf32, #tpu.memory_space<vmem>>, vector<1x16x12xf32>
    %60 = vector.shape_cast %59 : vector<1x16x12xf32> to vector<16x12xf32>
    %cst_23 = arith.constant dense<0.000000e+00> : vector<16x256xf32>
    %61 = tpu.matmul %60, %58, %cst_23 {dimension_numbers = #tpu.dot_dimension_numbers<[1], [0], [0], [1], [0, 0, 1, 1], [], []>} : vector<16x12xf32>, vector<12x256xf32>, vector<16x256xf32> -> vector<16x256xf32>
    %62 = arith.addf %54, %61 : vector<16x256xf32>
    %63 = vector.extract_strided_slice %37 {offsets = [0, 32], sizes = [4, 256], strides = [1, 1]} : vector<4x288xf32> to vector<4x256xf32>
    %64 = vector.extract_strided_slice %11 {offsets = [0, 32], sizes = [4, 256], strides = [1, 1]} : vector<4x288xf32> to vector<4x256xf32>
    %65 = vector.extract_strided_slice %45 {offsets = [0, 32], sizes = [4, 256], strides = [1, 1]} : vector<4x288xf32> to vector<4x256xf32>
    %66 = tpu.concatenate %63, %64, %65 in 0 : vector<4x256xf32>, vector<4x256xf32>, vector<4x256xf32> -> vector<12x256xf32>
    %c2 = arith.constant 2 : index
    %c0_24 = arith.constant 0 : index
    %c0_25 = arith.constant 0 : index
    %67 = vector.load %arg5[%c2, %c0_24, %c0_25] : memref<3x16x12xf32, #tpu.memory_space<vmem>>, vector<1x16x12xf32>
    %68 = vector.shape_cast %67 : vector<1x16x12xf32> to vector<16x12xf32>
    %cst_26 = arith.constant dense<0.000000e+00> : vector<16x256xf32>
    %69 = tpu.matmul %68, %66, %cst_26 {dimension_numbers = #tpu.dot_dimension_numbers<[1], [0], [0], [1], [0, 0, 1, 1], [], []>} : vector<16x12xf32>, vector<12x256xf32>, vector<16x256xf32> -> vector<16x256xf32>
    %70 = arith.addf %62, %69 : vector<16x256xf32>
    %c0_27 = arith.constant 0 : index
    %c0_28 = arith.constant 0 : index
    %c0_29 = arith.constant 0 : index
    %71 = vector.load %arg6[%c0_27, %c0_28, %c0_29] : memref<1x16x256xf32, #tpu.memory_space<vmem>>, vector<1x16x256xf32>
    %72 = vector.shape_cast %71 : vector<1x16x256xf32> to vector<16x256xf32>
    %73 = vector.shape_cast %70 : vector<16x256xf32> to vector<1x16x256xf32>
    tpu.vector_store %arg6[%c0_27, %c0_28, %c0_29], %73 {strides = array<i32>} : memref<1x16x256xf32, #tpu.memory_space<vmem>>, vector<1x16x256xf32>,
    return
  }
  func.func @transform_0(%arg0: i32, %arg1: i32) -> (i32, i32, i32) {
    %c0_i32 = arith.constant 0 : i32
    %c0_i32_0 = arith.constant 0 : i32
    return %arg0, %c0_i32, %arg1 : i32, i32, i32
  }
  func.func @transform_1(%arg0: i32, %arg1: i32) -> (i32, i32, i32) {
    %c2_i32 = arith.constant 2 : i32
    %0 = arith.muli %arg1, %c2_i32 : i32
    %c1_i32 = arith.constant 1 : i32
    %1 = arith.subi %0, %c1_i32 : i32
    %c0_i32 = arith.constant 0 : i32
    %2 = arith.maxsi %1, %c0_i32 : i32
    %c0_i32_0 = arith.constant 0 : i32
    %c0_i32_1 = arith.constant 0 : i32
    return %arg0, %c0_i32_0, %2 : i32, i32, i32
  }
  func.func @transform_2(%arg0: i32, %arg1: i32) -> (i32, i32, i32) {
    %c1_i32 = arith.constant 1 : i32
    %0 = arith.addi %arg1, %c1_i32 : i32
    %c2_i32 = arith.constant 2 : i32
    %1 = arith.muli %0, %c2_i32 : i32
    %c1_i32_0 = arith.constant 1 : i32
    %2 = arith.minsi %1, %c1_i32_0 : i32
    %c0_i32 = arith.constant 0 : i32
    %c0_i32_1 = arith.constant 0 : i32
    return %arg0, %c0_i32, %2 : i32, i32, i32
  }
  func.func @transform_3(%arg0: i32, %arg1: i32) -> (i32, i32, i32) {
    %c0_i32 = arith.constant 0 : i32
    %c0_i32_0 = arith.constant 0 : i32
    %c0_i32_1 = arith.constant 0 : i32
    %c0_i32_2 = arith.constant 0 : i32
    return %c0_i32, %c0_i32_0, %c0_i32_1 : i32, i32, i32
  }
  func.func @transform_4(%arg0: i32, %arg1: i32) -> (i32, i32, i32) {
    %c0_i32 = arith.constant 0 : i32
    %c0_i32_0 = arith.constant 0 : i32
    return %arg0, %c0_i32, %arg1 : i32, i32, i32
  }
}

</mosaic_0001>

<llo_original>
// kernel: upsample_pallas.1
$region0: #{upsample_pallas.1}
  #allocation0 [shape = 'u32[]', space=smem, size = 0x4, offset = 0x4, fixed_abs, tag = 'smem constant byte address 0x4 - core index']
  #allocation1 [shape = 'u32[144,128]{1,0:T(1,128)}', space=vmem, size = 0x12000, scoped, tag = 'internal scratch']
  %s0 = inlined_call_operand.vmem [shape: f32[2,4,256], index: 0, kind: input, shape index: {}, may-alias: {0,1,2}]
  %s1 = inlined_call_operand.vmem [shape: f32[2,4,256], index: 1, kind: input, shape index: {}, may-alias: {0,1,2}]
  %s2 = inlined_call_operand.vmem [shape: f32[2,4,256], index: 2, kind: input, shape index: {}, may-alias: {0,1,2}]
  %s3 = inlined_call_operand.vmem [shape: f32[3,16,12], index: 3, kind: input, shape index: {}]
  %s4 = inlined_call_operand.vmem [shape: f32[2,16,256], index: 4, kind: output, shape index: {}]
  %s5 = sld [smem:[#allocation0]]
  $region49: #{upsample_pallas.1} parent=0
    _
  %s7 = ssub.s32 1, %s5
  %s8 = scalar_select 0, %s7, %s5
  loop: start=0, step=1, limit=4
  $region2: #{upsample_pallas.1} parent=0 // loop_pre_header
    _
  $region3: #{upsample_pallas.1} parent=0 // loop_header
    %s10 = sphi 0, %s14
    %p11 = scmp.ge.s32.totalorder %s10, 4
    %s17 = sphi 0, %s29
    %s18 = sphi 0, %s25
    %s19 = sphi 0, %s17
    %s20 = sphi 0, %s18
    %s21 = sphi 0, %s19
    %s22 = sphi 0, %s20
    %s34 = sphi 0, %s36
    %s37 = sphi 0, %s34
    %s38 = sphi 0, %s37
    %s54 = sphi 0, %s38
    %s70 = sphi 0, %s72
    %s73 = sphi 0, %s70
    %s74 = sphi 0, %s73
    %s90 = sphi 0, %s74
    %s106 = sphi 0, %s108
    %s109 = sphi 0, %s106
    %s110 = sphi 0, %s109
    %s126 = sphi 0, %s110
    %s130 = sphi 0, %s130
    %s132 = sphi 0, %s130
    %s133 = sphi 0, %s132
    %s147 = sphi 0, %s133
    %s155 = sphi 0, %s157
    %s158 = sphi 0, %s155
    %s159 = sphi 0, %s158
    %s175 = sphi 0, %s159
  $region4: #{upsample_pallas.1} parent=0 // loop_header_branch
    %13 = sbr.rel (%p11) target = $region8
  $region5: #{upsample_pallas.1} parent=0 // loop_body
    %s15 = ssub.s32 %s10, 1
    %s16 = ssub.s32 %s10, 2
    %s23 = sadd.s32 1, %s18
    %p24 = scmp.ge.s32.totalorder %s23, 1
    %s25 = scalar_select %p24, 0, %s23
    %s26 = sadd.s32 1, %s17
    %s27 = scalar_select %p24, %s26, %s17
    %p28 = scmp.ge.s32.totalorder %s27, 2
    %s29 = scalar_select %p28, 0, %s27
    %s30 = ssub.s32 %s17, %s29
    %s31 = ssub.s32 %s18, %s25
    %s32 = sor.u32 %s30, %s31
    %p33 = scmp.eq.s32.totalorder %s32, 0
    %s35 = sadd.s32 %s34, 1
    %s36 = scalar_select %p33, %s34, %s35
    %p39 = pneg %p33
    %p40 = scmp.eq.s32.totalorder %s10, 1
    %p41 = por %p39, %p40
    %p42 = scmp.ne.s32.totalorder %s34, %s37
    %p43 = scmp.eq.s32.totalorder %s10, 0
    %p44 = por %p42, %p43
    %p45 = scmp.ne.s32.totalorder %s34, %s37
    %p46 = scmp.eq.s32.totalorder %s15, 1
    %p47 = por %p45, %p46
    %p48 = scmp.ne.s32.totalorder %s37, %s38
    %p49 = scmp.eq.s32.totalorder %s15, 0
    %p50 = por %p48, %p49
    %p51 = scmp.ne.s32.totalorder %s37, %s38
    %p52 = scmp.eq.s32.totalorder %s16, 1
    %p53 = por %p51, %p52
    %p55 = scmp.ne.s32.totalorder %s38, %s54
    %p56 = scmp.eq.s32.totalorder %s16, 0
    %p57 = por %p55, %p56
    %s58 = smul.u32 %s18, 2
    %s59 = ssub.s32 %s58, 1
    %p60 = scmp.gt.s32.totalorder %s59, 0
    %s61 = scalar_select %p60, %s59, 0
    %s62 = smul.u32 %s25, 2
    %s63 = ssub.s32 %s62, 1
    %p64 = scmp.gt.s32.totalorder %s63, 0
    %s65 = scalar_select %p64, %s63, 0
    %s66 = ssub.s32 %s17, %s29
    %s67 = ssub.s32 %s61, %s65
    %s68 = sor.u32 %s66, %s67
    %p69 = scmp.eq.s32.totalorder %s68, 0
    %s71 = sadd.s32 %s70, 1
    %s72 = scalar_select %p69, %s70, %s71
    %p75 = pneg %p69
    %p76 = scmp.eq.s32.totalorder %s10, 1
    %p77 = por %p75, %p76
    %p78 = scmp.ne.s32.totalorder %s70, %s73
    %p79 = scmp.eq.s32.totalorder %s10, 0
    %p80 = por %p78, %p79
    %p81 = scmp.ne.s32.totalorder %s70, %s73
    %p82 = scmp.eq.s32.totalorder %s15, 1
    %p83 = por %p81, %p82
    %p84 = scmp.ne.s32.totalorder %s73, %s74
    %p85 = scmp.eq.s32.totalorder %s15, 0
    %p86 = por %p84, %p85
    %p87 = scmp.ne.s32.totalorder %s73, %s74
    %p88 = scmp.eq.s32.totalorder %s16, 1
    %p89 = por %p87, %p88
    %p91 = scmp.ne.s32.totalorder %s74, %s90
    %p92 = scmp.eq.s32.totalorder %s16, 0
    %p93 = por %p91, %p92
    %s94 = sadd.s32 %s18, 1
    %s95 = smul.u32 %s94, 2
    %p96 = scmp.lt.s32.totalorder %s95, 1
    %s97 = scalar_select %p96, %s95, 1
    %s98 = sadd.s32 %s25, 1
    %s99 = smul.u32 %s98, 2
    %p100 = scmp.lt.s32.totalorder %s99, 1
    %s101 = scalar_select %p100, %s99, 1
    %s102 = ssub.s32 %s17, %s29
    %s103 = ssub.s32 %s97, %s101
    %s104 = sor.u32 %s102, %s103
    %p105 = scmp.eq.s32.totalorder %s104, 0
    %s107 = sadd.s32 %s106, 1
    %s108 = scalar_select %p105, %s106, %s107
    %p111 = pneg %p105
    %p112 = scmp.eq.s32.totalorder %s10, 1
    %p113 = por %p111, %p112
    %p114 = scmp.ne.s32.totalorder %s106, %s109
    %p115 = scmp.eq.s32.totalorder %s10, 0
    %p116 = por %p114, %p115
    %p117 = scmp.ne.s32.totalorder %s106, %s109
    %p118 = scmp.eq.s32.totalorder %s15, 1
    %p119 = por %p117, %p118
    %p120 = scmp.ne.s32.totalorder %s109, %s110
    %p121 = scmp.eq.s32.totalorder %s15, 0
    %p122 = por %p120, %p121
    %p123 = scmp.ne.s32.totalorder %s109, %s110
    %p124 = scmp.eq.s32.totalorder %s16, 1
    %p125 = por %p123, %p124
    %p127 = scmp.ne.s32.totalorder %s110, %s126
    %p128 = scmp.eq.s32.totalorder %s16, 0
    %p129 = por %p127, %p128
    %s131 = sadd.s32 %s130, 1
    %p134 = scmp.eq.s32.totalorder %s10, 1
    %p135 = scmp.ne.s32.totalorder %s130, %s132
    %p136 = scmp.eq.s32.totalorder %s10, 0
    %p137 = por %p135, %p136
    %p138 = scmp.ne.s32.totalorder %s130, %s132
    %p139 = scmp.eq.s32.totalorder %s15, 1
    %p140 = por %p138, %p139
    %p141 = scmp.ne.s32.totalorder %s132, %s133
    %p142 = scmp.eq.s32.totalorder %s15, 0
    %p143 = por %p141, %p142
    %p144 = scmp.ne.s32.totalorder %s132, %s133
    %p145 = scmp.eq.s32.totalorder %s16, 1
    %p146 = por %p144, %p145
    %p148 = scmp.ne.s32.totalorder %s133, %s147
    %p149 = scmp.eq.s32.totalorder %s16, 0
    %p150 = por %p148, %p149
    %s151 = ssub.s32 %s17, %s29
    %s152 = ssub.s32 %s18, %s25
    %s153 = sor.u32 %s151, %s152
    %p154 = scmp.eq.s32.totalorder %s153, 0
    %s156 = sadd.s32 %s155, 1
    %s157 = scalar_select %p154, %s155, %s156
    %p160 = pneg %p154
    %p161 = scmp.eq.s32.totalorder %s10, 1
    %p162 = por %p160, %p161
    %p163 = scmp.ne.s32.totalorder %s155, %s158
    %p164 = scmp.eq.s32.totalorder %s10, 0
    %p165 = por %p163, %p164
    %p166 = scmp.ne.s32.totalorder %s155, %s158
    %p167 = scmp.eq.s32.totalorder %s15, 1
    %p168 = por %p166, %p167
    %p169 = scmp.ne.s32.totalorder %s158, %s159
    %p170 = scmp.eq.s32.totalorder %s15, 0
    %p171 = por %p169, %p170
    %p172 = scmp.ne.s32.totalorder %s158, %s159
    %p173 = scmp.eq.s32.totalorder %s16, 1
    %p174 = por %p172, %p173
    %p176 = scmp.ne.s32.totalorder %s159, %s175
    %p177 = scmp.eq.s32.totalorder %s16, 0
    %p178 = por %p176, %p177
    %p179 = scmp.le.s32.totalorder 1, %s10
    %p180 = scmp.lt.s32.totalorder %s10, 3
    %p181 = pnand %p179, %p180
    %p182 = pneg %p181
    // Predicated region
    $region9: #{upsample_pallas.1} parent=5 // pred_check
      _
    $region10: #{upsample_pallas.1} parent=5 // pred_check_branch
      %184 = sbr.rel (%p181) target = $region12
    $region11: #{upsample_pallas.1} parent=5 // pred_region
      %s185 = ssub.s32 %s10, 1
      // Predicated region
      $region13: #{upsample_pallas.1} parent=11 // pred_check
        %p186 = pneg %p143
      $region14: #{upsample_pallas.1} parent=11 // pred_check_branch
        %188 = sbr.rel (%p186) target = $region16
      $region15: #{upsample_pallas.1} parent=11 // pred_region
        _
      $region16: #{upsample_pallas.1} parent=11 // pred_fallthru
        _
    $region12: #{upsample_pallas.1} parent=5 // pred_fallthru
      _
    %p189 = scmp.lt.s32.totalorder %s10, 2
    // Predicated region
    $region17: #{upsample_pallas.1} parent=5 // pred_check
      %p190 = pneg %p189
    $region18: #{upsample_pallas.1} parent=5 // pred_check_branch
      %192 = sbr.rel (%p190) target = $region20
    $region19: #{upsample_pallas.1} parent=5 // pred_region
      // Predicated region
      $region21: #{upsample_pallas.1} parent=19 // pred_check
        %p193 = pneg %p44
      $region22: #{upsample_pallas.1} parent=19 // pred_check_branch
        %195 = sbr.rel (%p193) target = $region24
      $region23: #{upsample_pallas.1} parent=19 // pred_region
        %s196 = smul.u32 2, %s18
        %p197 = scmp.lt.s32.totalorder %s17, 1
        %s198 = scalar_select %p197, %s17, 1
        %p199 = scmp.lt.s32.totalorder %s196, 1
        %s200 = scalar_select %p199, %s196, 1
        %s201 = smul.addr %s198, 2
        %s202 = sadd.s32 %s200, %s201
        %s203 = smul.addr %s202, 4
        %s204 = scalar_lea.vmem %s0, %s203
        %s205 = smul.u32 2, %s18
      $region24: #{upsample_pallas.1} parent=19 // pred_fallthru
        _
      // Predicated region
      $region25: #{upsample_pallas.1} parent=19 // pred_check
        %p206 = pneg %p80
      $region26: #{upsample_pallas.1} parent=19 // pred_check_branch
        %208 = sbr.rel (%p206) target = $region28
      $region27: #{upsample_pallas.1} parent=19 // pred_region
        %s209 = smul.u32 %s18, 2
        %s210 = ssub.s32 %s209, 1
        %p211 = scmp.gt.s32.totalorder %s210, 0
        %s212 = scalar_select %p211, %s210, 0
        %p213 = scmp.lt.s32.totalorder %s17, 1
        %s214 = scalar_select %p213, %s17, 1
        %p215 = scmp.lt.s32.totalorder %s212, 1
        %s216 = scalar_select %p215, %s212, 1
        %s217 = smul.addr %s214, 2
        %s218 = sadd.s32 %s216, %s217
        %s219 = smul.addr %s218, 4
        %s220 = scalar_lea.vmem %s1, %s219
        %s221 = smul.u32 %s18, 2
        %s222 = ssub.s32 %s221, 1
        %p223 = scmp.gt.s32.totalorder %s222, 0
        %s224 = scalar_select %p223, %s222, 0
      $region28: #{upsample_pallas.1} parent=19 // pred_fallthru
        _
      // Predicated region
      $region29: #{upsample_pallas.1} parent=19 // pred_check
        %p225 = pneg %p116
      $region30: #{upsample_pallas.1} parent=19 // pred_check_branch
        %227 = sbr.rel (%p225) target = $region32
      $region31: #{upsample_pallas.1} parent=19 // pred_region
        %s228 = sadd.s32 %s18, 1
        %s229 = smul.u32 %s228, 2
        %p230 = scmp.lt.s32.totalorder %s229, 1
        %s231 = scalar_select %p230, %s229, 1
        %p232 = scmp.lt.s32.totalorder %s17, 1
        %s233 = scalar_select %p232, %s17, 1
        %p234 = scmp.lt.s32.totalorder %s231, 1
        %s235 = scalar_select %p234, %s231, 1
        %s236 = smul.addr %s233, 2
        %s237 = sadd.s32 %s235, %s236
        %s238 = smul.addr %s237, 4
        %s239 = scalar_lea.vmem %s2, %s238
        %s240 = sadd.s32 %s18, 1
        %s241 = smul.u32 %s240, 2
        %p242 = scmp.lt.s32.totalorder %s241, 1
        %s243 = scalar_select %p242, %s241, 1
      $region32: #{upsample_pallas.1} parent=19 // pred_fallthru
        _
    $region20: #{upsample_pallas.1} parent=5 // pred_fallthru
      _
    %p244 = scmp.le.s32.totalorder 1, %s10
    %p245 = scmp.lt.s32.totalorder %s10, 3
    %p246 = pnand %p244, %p245
    %p247 = pneg %p246
    // Predicated region
    $region33: #{upsample_pallas.1} parent=5 // pred_check
      _
    $region34: #{upsample_pallas.1} parent=5 // pred_check_branch
      %249 = sbr.rel (%p246) target = $region36
    $region35: #{upsample_pallas.1} parent=5 // pred_region
      %s250 = ssub.s32 %s10, 1
      %s251 = smul.u32 2, %s20
      %p252 = scmp.lt.s32.totalorder %s19, 1
      %s253 = scalar_select %p252, %s19, 1
      %p254 = scmp.lt.s32.totalorder %s251, 1
      %s255 = scalar_select %p254, %s251, 1
      %s256 = smul.addr %s253, 2
      %s257 = sadd.s32 %s255, %s256
      %s258 = smul.addr %s257, 4
      %s259 = scalar_lea.vmem %s0, %s258
      %p260 = pneg %p50
      %p261 = pneg %p47
      %s262 = smul.u32 %s20, 2
      %s263 = ssub.s32 %s262, 1
      %p264 = scmp.gt.s32.totalorder %s263, 0
      %s265 = scalar_select %p264, %s263, 0
      %p266 = scmp.lt.s32.totalorder %s19, 1
      %s267 = scalar_select %p266, %s19, 1
      %p268 = scmp.lt.s32.totalorder %s265, 1
      %s269 = scalar_select %p268, %s265, 1
      %s270 = smul.addr %s267, 2
      %s271 = sadd.s32 %s269, %s270
      %s272 = smul.addr %s271, 4
      %s273 = scalar_lea.vmem %s1, %s272
      %p274 = pneg %p86
      %p275 = pneg %p83
      %s276 = sadd.s32 %s20, 1
      %s277 = smul.u32 %s276, 2
      %p278 = scmp.lt.s32.totalorder %s277, 1
      %s279 = scalar_select %p278, %s277, 1
      %p280 = scmp.lt.s32.totalorder %s19, 1
      %s281 = scalar_select %p280, %s19, 1
      %p282 = scmp.lt.s32.totalorder %s279, 1
      %s283 = scalar_select %p282, %s279, 1
      %s284 = smul.addr %s281, 2
      %s285 = sadd.s32 %s283, %s284
      %s286 = smul.addr %s285, 4
      %s287 = scalar_lea.vmem %s2, %s286
      %p288 = pneg %p122
      %p289 = pneg %p119
      %p290 = pneg %p143
      %p291 = pneg %p140
      %p292 = pneg %p171
      %p293 = pneg %p168
      %s294 = smul.u32 2, %s20
      %p295 = scmp.lt.s32.totalorder %s19, 1
      %s296 = scalar_select %p295, %s19, 1
      %p297 = scmp.lt.s32.totalorder %s294, 1
      %s298 = scalar_select %p297, %s294, 1
      %s299 = smul.addr %s296, 4
      %s300 = sadd.s32 %s298, %s299
      %s301 = smul.addr %s300, 8
      %s302 = scalar_lea.vmem %s4, %s301
      %s303 = smul.u32 2, %s20
      %p304 = scmp.lt.s32.totalorder %s19, 1
      %s305 = scalar_select %p304, %s19, 1
      %p306 = scmp.lt.s32.totalorder %s303, 1
      %s307 = scalar_select %p306, %s303, 1
      %s308 = smul.addr %s305, 2
      %s309 = sadd.s32 %s307, %s308
      %s310 = smul.addr %s309, 4
      %s311 = scalar_lea.vmem %s0, %s310
      %s312 = smul.u32 2, %s20
      %s313 = smul.u32 %s20, 2
      %s314 = ssub.s32 %s313, 1
      %p315 = scmp.gt.s32.totalorder %s314, 0
      %s316 = scalar_select %p315, %s314, 0
      %p317 = scmp.lt.s32.totalorder %s19, 1
      %s318 = scalar_select %p317, %s19, 1
      %p319 = scmp.lt.s32.totalorder %s316, 1
      %s320 = scalar_select %p319, %s316, 1
      %s321 = smul.addr %s318, 2
      %s322 = sadd.s32 %s320, %s321
      %s323 = smul.addr %s322, 4
      %s324 = scalar_lea.vmem %s1, %s323
      %s325 = smul.u32 %s20, 2
      %s326 = ssub.s32 %s325, 1
      %p327 = scmp.gt.s32.totalorder %s326, 0
      %s328 = scalar_select %p327, %s326, 0
      %s329 = sadd.s32 %s20, 1
      %s330 = smul.u32 %s329, 2
      %p331 = scmp.lt.s32.totalorder %s330, 1
      %s332 = scalar_select %p331, %s330, 1
      %p333 = scmp.lt.s32.totalorder %s19, 1
      %s334 = scalar_select %p333, %s19, 1
      %p335 = scmp.lt.s32.totalorder %s332, 1
      %s336 = scalar_select %p335, %s332, 1
      %s337 = smul.addr %s334, 2
      %s338 = sadd.s32 %s336, %s337
      %s339 = smul.addr %s338, 4
      %s340 = scalar_lea.vmem %s2, %s339
      %s341 = sadd.s32 %s20, 1
      %s342 = smul.u32 %s341, 2
      %p343 = scmp.lt.s32.totalorder %s342, 1
      %s344 = scalar_select %p343, %s342, 1
      %s345 = smul.u32 2, %s20
      %p346 = scmp.lt.s32.totalorder %s19, 1
      %s347 = scalar_select %p346, %s19, 1
      %p348 = scmp.lt.s32.totalorder %s345, 1
      %s349 = scalar_select %p348, %s345, 1
      %s350 = smul.addr %s347, 4
      %s351 = sadd.s32 %s349, %s350
      %s352 = smul.addr %s351, 8
      %s353 = scalar_lea.vmem %s4, %s352
      %s354 = smul.u32 2, %s20
      %p355 = scmp.eq.s32.totalorder %s20, 0
      %v356 = vld [vmem:[%s324] sm:$0xf]
      %s357 = scalar_select %p355, 1, 0
      %v358 = vstv %s357
      %vm359 = vcmp.eq.s32.totalorder %v358, 1
      %v360 = vsel %vm359, 0.0, %v356
      %v361 = vld [vmem:[%s340] sm:$0xf]
      %v362 = vsel %vm359, 0.0, %v361
      %v363 = vld [vmem:[%s311] sm:$0xff]
      %365 = vrot.lane.b32.xlu0 %v360, 16
      %v366 = vpop.permute.xlu0 %365
      %v369 = vcombine.high %v363, %v363
      %370 = vrot.lane.b32.xlu0 %v363, 16
      %v371 = vpop.permute.xlu0 %370
      %372 = vrot.lane.b32.xlu0 %v369, 16
      %v373 = vpop.permute.xlu0 %372
      %vm374 = vcmask 130048
      %v375 = vsel %vm374, %v371, %v373
      %379 = vrot.lane.b32.xlu0 %v362, 16
      %v380 = vpop.permute.xlu0 %379
      %v382 = vsel %vm374, %v366, %v371
      %v383 = vsel %vm374, %v373, %v380
      %v384 = vlaneseq
      %v385 = vand.u32 %v384, 127
      %v386 = vadd.s32 %v385, 128
      %v387 = vadd.s32 %v385, 256
      %vm388 = vcmp.lt.s32.totalorder %v385, 0
      %v389 = vsub.s32 0, %v385
      %v390 = vsel %vm388, %v389, %v385
      %v391 = vshrl.u32 %v390, 4
      %v392 = vand.u32 %v390, 15
      %v393 = vsub.s32 0, %v392
      %v394 = vsel %vm388, %v393, %v392
      %vm395 = vcmp.lt.s32.totalorder %v386, 0
      %v396 = vsub.s32 0, %v386
      %v397 = vsel %vm395, %v396, %v386
      %v398 = vshrl.u32 %v397, 4
      %v399 = vand.u32 %v397, 15
      %v400 = vsub.s32 0, %v399
      %v401 = vsel %vm395, %v400, %v399
      %vm402 = vcmp.lt.s32.totalorder %v387, 0
      %v403 = vsub.s32 0, %v387
      %v404 = vsel %vm402, %v403, %v387
      %v405 = vshrl.u32 %v404, 4
      %v406 = vand.u32 %v404, 15
      %v407 = vsub.s32 0, %v406
      %v408 = vsel %vm402, %v407, %v406
      %vm409 = vcmp.ne.s32.totalorder %v394, 0
      %vm410 = vcmp.ne.s32.totalorder %v401, 0
      %vm411 = vcmp.ne.s32.totalorder %v408, 0
      %vm412 = vcmp.lt.s32.totalorder %v394, 0
      %vm413 = vcmp.lt.s32.totalorder %v401, 0
      %vm414 = vcmp.lt.s32.totalorder %v408, 0
      %vm415 = vmand %vm412, %vm409
      %vm416 = vmand %vm413, %vm410
      %vm417 = vmand %vm414, %vm411
      %v418 = vadd.s32 %v394, 16
      %v419 = vadd.s32 %v401, 16
      %v420 = vadd.s32 %v408, 16
      %v421 = vsel %vm415, %v418, %v394
      %v422 = vsel %vm416, %v419, %v401
      %v423 = vsel %vm417, %v420, %v408
      %426 = vrot.lane.b32.xlu0 %v382, 1
      %v427 = vpop.permute.xlu0 %426
      %428 = vrot.lane.b32.xlu0 %v375, 1
      %v429 = vpop.permute.xlu0 %428
      %430 = vrot.lane.b32.xlu0 %v383, 1
      %v431 = vpop.permute.xlu0 %430
      %vm432 = vcmask 7168
      %v433 = vsel %vm432, %v427, %v429
      %v434 = vsel %vm432, %v429, %v431
      %v438 = vsel %vm432, 0.0, %v427
      %vm439 = vcmp.eq.s32.totalorder %v421, 0
      %vm440 = vcmp.eq.s32.totalorder %v422, 0
      %vm441 = vcmp.eq.s32.totalorder %v423, 0
      %v442 = vsel %vm439, 1, 0
      %v443 = vsel %vm440, 1, 0
      %v444 = vsel %vm441, 1, 0
      %vm445 = vcmp.eq.s32.totalorder %v442, 1
      %vm446 = vcmp.eq.s32.totalorder %v443, 1
      %vm447 = vcmp.eq.s32.totalorder %v444, 1
      %v448 = vsel %vm445, 0.0, %v438
      %v449 = vsel %vm446, 0.0, %v433
      %v450 = vsel %vm447, 0.0, %v434
      %451 = vrot.lane.b32.xlu0 %v382, 127
      %v452 = vpop.permute.xlu0 %451
      %453 = vrot.lane.b32.xlu0 %v375, 127
      %v454 = vpop.permute.xlu0 %453
      %455 = vrot.lane.b32.xlu0 %v383, 127
      %v456 = vpop.permute.xlu0 %455
      %vm457 = vcmask 1039360
      %v458 = vsel %vm457, %v452, %v454
      %v459 = vsel %vm457, %v454, %v456
      %vm463 = vcmask 252928
      %v464 = vsel %vm463, %v456, 0.0
      %vm465 = vcmp.eq.s32.totalorder %v421, 15
      %vm466 = vcmp.eq.s32.totalorder %v422, 15
      %vm467 = vcmp.eq.s32.totalorder %v423, 15
      %v468 = vsel %vm465, 1, 0
      %v469 = vsel %vm466, 1, 0
      %v470 = vsel %vm467, 1, 0
      %vm471 = vcmp.eq.s32.totalorder %v468, 1
      %vm472 = vcmp.eq.s32.totalorder %v469, 1
      %vm473 = vcmp.eq.s32.totalorder %v470, 1
      %v474 = vsel %vm471, 0.0, %v458
      %v475 = vsel %vm472, 0.0, %v459
      %v476 = vsel %vm473, 0.0, %v464
      %v477 = vrot.slane %v382, 4
      %v478 = vrot.slane %v375, 4
      %vm481 = vcmask 1043456
      %v482 = vsel %vm481, %v448, %v477
      %v483 = vsel %vm481, %v449, %v478
      %v484 = vld [vmem:[%s3] sm:$0xff]
      %v485 = vld [vmem:[%s3 + $0x8] sm:$0xff]
      %v486 = vrot.slane %v383, 4
      %v488 = vsel %vm481, %v450, %v486
      %s489 = scalar_lea.vmem %s3, 16
      %v490 = vld [vmem:[%s489] sm:$0xff]
      %v491 = vld [vmem:[%s489 + $0x8] sm:$0xff]
      %498 = vrot.lane.b32.xlu0 %v482, 112
      %v499 = vpop.permute.xlu0 %498
      %500 = vrot.lane.b32.xlu0 %v483, 112
      %v501 = vpop.permute.xlu0 %500
      %502 = vrot.lane.b32.xlu0 %v488, 112
      %v503 = vpop.permute.xlu0 %502
      %504 = vrot.lane.b32.xlu0 %v474, 112
      %v505 = vpop.permute.xlu0 %504
      %506 = vrot.lane.b32.xlu0 %v475, 112
      %v507 = vpop.permute.xlu0 %506
      %508 = vrot.lane.b32.xlu0 %v476, 112
      %v509 = vpop.permute.xlu0 %508
      %vm510 = vcmask 916480
      %v511 = vsel %vm510, %v499, %v501
      %v512 = vsel %vm510, %v501, %v503
      %v513 = vsel %vm510, %v505, %v507
      %v514 = vsel %vm510, %v507, %v509
      %vm517 = vcmask 97280
      %v519 = vsel %vm517, %v490, 0
      %v522 = vsel %vm517, %v491, 0
      %v524 = vsel %vm481, %v513, 0
      %v526 = vsel %vm481, %v514, 0
      %528 = vmatprep.subr.mxu0 %v512
      %529 = vmatpush1.msra.mxu0 %v511
      %530 = vmatprep.subr.mxu0 %v526
      %531 = vmatpush1.msra.mxu0 %v524
      %532 = vmatprep.subr.mxu0 0.0
      %533 = vmatpush1.msra.mxu0 0.0
      %534 = vmatprep.subr.mxu0 0.0
      %535 = vmatpush1.msra.mxu0 0.0
      %536 = vmatprep.subr.mxu0 0.0
      %537 = vmatpush1.msra.mxu0 0.0
      %538 = vmatprep.subr.mxu0 0.0
      %539 = vmatpush1.msra.mxu0 0.0
      %540 = vmatprep.subr.mxu0 0.0
      %541 = vmatpush1.msra.mxu0 0.0
      %542 = vmatprep.subr.mxu0 0.0
      %543 = vmatpush1.msra.mxu0 0.0
      %544 = vmatprep.subr.mxu0 0.0
      %545 = vmatpush1.msra.mxu0 0.0
      %546 = vmatprep.subr.mxu0 0.0
      %547 = vmatpush1.msra.mxu0 0.0
      %548 = vmatprep.subr.mxu0 0.0
      %549 = vmatpush1.msra.mxu0 0.0
      %550 = vmatprep.subr.mxu0 0.0
      %551 = vmatpush1.msra.mxu0 0.0
      %552 = vmatprep.subr.mxu0 0.0
      %553 = vmatpush1.msra.mxu0 0.0
      %554 = vmatprep.subr.mxu0 0.0
      %555 = vmatpush1.msra.mxu0 0.0
      %556 = vmatprep.subr.mxu0 0.0
      %557 = vmatpush1.msra.mxu0 0.0
      %558 = vmatprep.subr.mxu0 0.0
      %559 = vmatpush1.msra.mxu0 0.0
      %560 = vmatprep.subr.mxu0 0.0
      %561 = vmatpush1.msra.mxu0 0.0
      %562 = vmatprep.subr.mxu0 0.0
      %563 = vmatpush1.msra.mxu0 0.0
      %564 = vmatprep.subr.mxu0 0.0
      %565 = vmatpush1.msra.mxu0 0.0
      %566 = vmatprep.subr.mxu0 0.0
      %567 = vmatpush1.msra.mxu0 0.0
      %568 = vmatprep.subr.mxu0 0.0
      %569 = vmatpush1.msra.mxu0 0.0
      %570 = vmatprep.subr.mxu0 0.0
      %571 = vmatpush1.msra.mxu0 0.0
      %572 = vmatprep.subr.mxu0 0.0
      %573 = vmatpush1.msra.mxu0 0.0
      %574 = vmatprep.subr.mxu0 0.0
      %575 = vmatpush1.msra.mxu0 0.0
      %576 = vmatprep.subr.mxu0 0.0
      %577 = vmatpush1.msra.mxu0 0.0
      %578 = vmatprep.subr.mxu0 0.0
      %579 = vmatpush1.msra.mxu0 0.0
      %580 = vmatprep.subr.mxu0 0.0
      %581 = vmatpush1.msra.mxu0 0.0
      %582 = vmatprep.subr.mxu0 0.0
      %583 = vmatpush1.msra.mxu0 0.0
      %584 = vmatprep.subr.mxu0 0.0
      %585 = vmatpush1.msra.mxu0 0.0
      %586 = vmatprep.subr.mxu0 0.0
      %587 = vmatpush1.msra.mxu0 0.0
      %588 = vmatprep.subr.mxu0 0.0
      %589 = vmatpush1.msra.mxu0 0.0
      %590 = vmatprep.subr.mxu0 0.0
      %591 = vmatpush1.msra.mxu0 0.0
      %592 = vmatprep.mubr.f32.mxu0 0.0
      %593 = vmatmul.mubr.f32.gmra.mrb[0].mxu0 %v519
      %v594 = vpop.f32.mrb[0].mxu0
      %v595 = vadd.f32 0.0, %v594
      %v596 = vpop.f32.mrb[0].mxu0
      %v597 = vadd.f32 0.0, %v596
      %598 = vmatprep.mubr.f32.mxu0 0.0
      %599 = vmatmul.mubr.f32.gmra.mrb[0].mxu0 %v522
      %v600 = vpop.f32.mrb[0].mxu0
      %v601 = vadd.f32 0.0, %v600
      %v602 = vpop.f32.mrb[0].mxu0
      %v603 = vadd.f32 0.0, %v602
      %604 = vdwg.mxu0
      %v606 = vsel %vm517, %v484, 0
      %v609 = vsel %vm517, %v485, 0
      %v611 = vsel %vm481, %v474, 0
      %v613 = vsel %vm481, %v475, 0
      %615 = vmatprep.subr.mxu0 %v483
      %616 = vmatpush1.msra.mxu0 %v482
      %617 = vmatprep.subr.mxu0 %v613
      %618 = vmatpush1.msra.mxu0 %v611
      %619 = vmatprep.subr.mxu0 0.0
      %620 = vmatpush1.msra.mxu0 0.0
      %621 = vmatprep.subr.mxu0 0.0
      %622 = vmatpush1.msra.mxu0 0.0
      %623 = vmatprep.subr.mxu0 0.0
      %624 = vmatpush1.msra.mxu0 0.0
      %625 = vmatprep.subr.mxu0 0.0
      %626 = vmatpush1.msra.mxu0 0.0
      %627 = vmatprep.subr.mxu0 0.0
      %628 = vmatpush1.msra.mxu0 0.0
      %629 = vmatprep.subr.mxu0 0.0
      %630 = vmatpush1.msra.mxu0 0.0
      %631 = vmatprep.subr.mxu0 0.0
      %632 = vmatpush1.msra.mxu0 0.0
      %633 = vmatprep.subr.mxu0 0.0
      %634 = vmatpush1.msra.mxu0 0.0
      %635 = vmatprep.subr.mxu0 0.0
      %636 = vmatpush1.msra.mxu0 0.0
      %637 = vmatprep.subr.mxu0 0.0
      %638 = vmatpush1.msra.mxu0 0.0
      %639 = vmatprep.subr.mxu0 0.0
      %640 = vmatpush1.msra.mxu0 0.0
      %641 = vmatprep.subr.mxu0 0.0
      %642 = vmatpush1.msra.mxu0 0.0
      %643 = vmatprep.subr.mxu0 0.0
      %644 = vmatpush1.msra.mxu0 0.0
      %645 = vmatprep.subr.mxu0 0.0
      %646 = vmatpush1.msra.mxu0 0.0
      %647 = vmatprep.subr.mxu0 0.0
      %648 = vmatpush1.msra.mxu0 0.0
      %649 = vmatprep.subr.mxu0 0.0
      %650 = vmatpush1.msra.mxu0 0.0
      %651 = vmatprep.subr.mxu0 0.0
      %652 = vmatpush1.msra.mxu0 0.0
      %653 = vmatprep.subr.mxu0 0.0
      %654 = vmatpush1.msra.mxu0 0.0
      %655 = vmatprep.subr.mxu0 0.0
      %656 = vmatpush1.msra.mxu0 0.0
      %657 = vmatprep.subr.mxu0 0.0
      %658 = vmatpush1.msra.mxu0 0.0
      %659 = vmatprep.subr.mxu0 0.0
      %660 = vmatpush1.msra.mxu0 0.0
      %661 = vmatprep.subr.mxu0 0.0
      %662 = vmatpush1.msra.mxu0 0.0
      %663 = vmatprep.subr.mxu0 0.0
      %664 = vmatpush1.msra.mxu0 0.0
      %665 = vmatprep.subr.mxu0 0.0
      %666 = vmatpush1.msra.mxu0 0.0
      %667 = vmatprep.subr.mxu0 0.0
      %668 = vmatpush1.msra.mxu0 0.0
      %669 = vmatprep.subr.mxu0 0.0
      %670 = vmatpush1.msra.mxu0 0.0
      %671 = vmatprep.subr.mxu0 0.0
      %672 = vmatpush1.msra.mxu0 0.0
      %673 = vmatprep.subr.mxu0 0.0
      %674 = vmatpush1.msra.mxu0 0.0
      %675 = vmatprep.subr.mxu0 0.0
      %676 = vmatpush1.msra.mxu0 0.0
      %677 = vmatprep.subr.mxu0 0.0
      %678 = vmatpush1.msra.mxu0 0.0
      %679 = vmatprep.mubr.f32.mxu0 0.0
      %680 = vmatmul.mubr.f32.gmra.mrb[0].mxu0 %v606
      %v681 = vpop.f32.mrb[0].mxu0
      %v682 = vadd.f32 %v595, %v681
      %v683 = vpop.f32.mrb[0].mxu0
      %v684 = vadd.f32 %v597, %v683
      %685 = vmatprep.mubr.f32.mxu0 0.0
      %686 = vmatmul.mubr.f32.gmra.mrb[0].mxu0 %v609
      %v687 = vpop.f32.mrb[0].mxu0
      %v688 = vadd.f32 %v601, %v687
      %v689 = vpop.f32.mrb[0].mxu0
      %v690 = vadd.f32 %v603, %v689
      %691 = vdwg.mxu0
      %s692 = scalar_lea.vmem %s3, 32
      %v693 = vld [vmem:[%s692] sm:$0xff]
      %v694 = vld [vmem:[%s692 + $0x8] sm:$0xff]
      %695 = vrot.lane.b32.xlu0 %v482, 96
      %v696 = vpop.permute.xlu0 %695
      %697 = vrot.lane.b32.xlu0 %v483, 96
      %v698 = vpop.permute.xlu0 %697
      %699 = vrot.lane.b32.xlu0 %v488, 96
      %v700 = vpop.permute.xlu0 %699
      %701 = vrot.lane.b32.xlu0 %v474, 96
      %v702 = vpop.permute.xlu0 %701
      %703 = vrot.lane.b32.xlu0 %v475, 96
      %v704 = vpop.permute.xlu0 %703
      %705 = vrot.lane.b32.xlu0 %v476, 96
      %v706 = vpop.permute.xlu0 %705
      %vm707 = vcmask 785408
      %v708 = vsel %vm707, %v696, %v698
      %v709 = vsel %vm707, %v698, %v700
      %v710 = vsel %vm707, %v702, %v704
      %v711 = vsel %vm707, %v704, %v706
      %v715 = vsel %vm517, %v693, 0
      %v718 = vsel %vm517, %v694, 0
      %v720 = vsel %vm481, %v710, 0
      %v722 = vsel %vm481, %v711, 0
      %724 = vmatprep.subr.mxu0 %v709
      %725 = vmatpush1.msra.mxu0 %v708
      %726 = vmatprep.subr.mxu0 %v722
      %727 = vmatpush1.msra.mxu0 %v720
      %728 = vmatprep.subr.mxu0 0.0
      %729 = vmatpush1.msra.mxu0 0.0
      %730 = vmatprep.subr.mxu0 0.0
      %731 = vmatpush1.msra.mxu0 0.0
      %732 = vmatprep.subr.mxu0 0.0
      %733 = vmatpush1.msra.mxu0 0.0
      %734 = vmatprep.subr.mxu0 0.0
      %735 = vmatpush1.msra.mxu0 0.0
      %736 = vmatprep.subr.mxu0 0.0
      %737 = vmatpush1.msra.mxu0 0.0
      %738 = vmatprep.subr.mxu0 0.0
      %739 = vmatpush1.msra.mxu0 0.0
      %740 = vmatprep.subr.mxu0 0.0
      %741 = vmatpush1.msra.mxu0 0.0
      %742 = vmatprep.subr.mxu0 0.0
      %743 = vmatpush1.msra.mxu0 0.0
      %744 = vmatprep.subr.mxu0 0.0
      %745 = vmatpush1.msra.mxu0 0.0
      %746 = vmatprep.subr.mxu0 0.0
      %747 = vmatpush1.msra.mxu0 0.0
      %748 = vmatprep.subr.mxu0 0.0
      %749 = vmatpush1.msra.mxu0 0.0
      %750 = vmatprep.subr.mxu0 0.0
      %751 = vmatpush1.msra.mxu0 0.0
      %752 = vmatprep.subr.mxu0 0.0
      %753 = vmatpush1.msra.mxu0 0.0
      %754 = vmatprep.subr.mxu0 0.0
      %755 = vmatpush1.msra.mxu0 0.0
      %756 = vmatprep.subr.mxu0 0.0
      %757 = vmatpush1.msra.mxu0 0.0
      %758 = vmatprep.subr.mxu0 0.0
      %759 = vmatpush1.msra.mxu0 0.0
      %760 = vmatprep.subr.mxu0 0.0
      %761 = vmatpush1.msra.mxu0 0.0
      %762 = vmatprep.subr.mxu0 0.0
      %763 = vmatpush1.msra.mxu0 0.0
      %764 = vmatprep.subr.mxu0 0.0
      %765 = vmatpush1.msra.mxu0 0.0
      %766 = vmatprep.subr.mxu0 0.0
      %767 = vmatpush1.msra.mxu0 0.0
      %768 = vmatprep.subr.mxu0 0.0
      %769 = vmatpush1.msra.mxu0 0.0
      %770 = vmatprep.subr.mxu0 0.0
      %771 = vmatpush1.msra.mxu0 0.0
      %772 = vmatprep.subr.mxu0 0.0
      %773 = vmatpush1.msra.mxu0 0.0
      %774 = vmatprep.subr.mxu0 0.0
      %775 = vmatpush1.msra.mxu0 0.0
      %776 = vmatprep.subr.mxu0 0.0
      %777 = vmatpush1.msra.mxu0 0.0
      %778 = vmatprep.subr.mxu0 0.0
      %779 = vmatpush1.msra.mxu0 0.0
      %780 = vmatprep.subr.mxu0 0.0
      %781 = vmatpush1.msra.mxu0 0.0
      %782 = vmatprep.subr.mxu0 0.0
      %783 = vmatpush1.msra.mxu0 0.0
      %784 = vmatprep.subr.mxu0 0.0
      %785 = vmatpush1.msra.mxu0 0.0
      %786 = vmatprep.subr.mxu0 0.0
      %787 = vmatpush1.msra.mxu0 0.0
      %788 = vmatprep.mubr.f32.mxu0 0.0
      %789 = vmatmul.mubr.f32.gmra.mrb[0].mxu0 %v715
      %v790 = vpop.f32.mrb[0].mxu0
      %v791 = vadd.f32 0.0, %v790
      %v792 = vpop.f32.mrb[0].mxu0
      %v793 = vadd.f32 0.0, %v792
      %794 = vmatprep.mubr.f32.mxu0 0.0
      %795 = vmatmul.mubr.f32.gmra.mrb[0].mxu0 %v718
      %v796 = vpop.f32.mrb[0].mxu0
      %v797 = vadd.f32 0.0, %v796
      %v798 = vpop.f32.mrb[0].mxu0
      %v799 = vadd.f32 0.0, %v798
      %800 = vdwg.mxu0
      %v801 = vadd.f32 %v682, %v791
      %v802 = vadd.f32 %v684, %v793
      %v803 = vadd.f32 %v688, %v797
      %v804 = vadd.f32 %v690, %v799
      %805 = vst [vmem:[%s353] sm:$0xff] %v801
      %806 = vst [vmem:[%s353 + $0x8] sm:$0xff] %v802
      %807 = vst [vmem:[%s353 + $0x10] sm:$0xff] %v803
      %808 = vst [vmem:[%s353 + $0x18] sm:$0xff] %v804
      %s809 = smul.u32 2, %s20
      %p810 = scmp.lt.s32.totalorder %s19, 1
      %s811 = scalar_select %p810, %s19, 1
      %p812 = scmp.lt.s32.totalorder %s809, 1
      %s813 = scalar_select %p812, %s809, 1
      %s814 = smul.addr %s811, 4
      %s815 = sadd.s32 %s813, %s814
      %s816 = smul.addr %s815, 8
      %s817 = scalar_lea.vmem %s4, %s816
      // Predicated region
      $region37: #{upsample_pallas.1} parent=35 // pred_check
        %p818 = pneg %p168
      $region38: #{upsample_pallas.1} parent=35 // pred_check_branch
        %820 = sbr.rel (%p818) target = $region40
      $region39: #{upsample_pallas.1} parent=35 // pred_region
        %s821 = smul.u32 2, %s20
      $region40: #{upsample_pallas.1} parent=35 // pred_fallthru
        _
    $region36: #{upsample_pallas.1} parent=5 // pred_fallthru
      _
    %p822 = scmp.le.s32.totalorder 2, %s10
    // Predicated region
    $region41: #{upsample_pallas.1} parent=5 // pred_check
      %p823 = pneg %p822
    $region42: #{upsample_pallas.1} parent=5 // pred_check_branch
      %825 = sbr.rel (%p823) target = $region44
    $region43: #{upsample_pallas.1} parent=5 // pred_region
      %s826 = ssub.s32 %s10, 2
      // Predicated region
      $region45: #{upsample_pallas.1} parent=43 // pred_check
        %p827 = pneg %p174
      $region46: #{upsample_pallas.1} parent=43 // pred_check_branch
        %829 = sbr.rel (%p827) target = $region48
      $region47: #{upsample_pallas.1} parent=43 // pred_region
        %s830 = smul.u32 2, %s22
        %p831 = scmp.lt.s32.totalorder %s21, 1
        %s832 = scalar_select %p831, %s21, 1
        %p833 = scmp.lt.s32.totalorder %s830, 1
        %s834 = scalar_select %p833, %s830, 1
        %s835 = smul.addr %s832, 4
        %s836 = sadd.s32 %s834, %s835
        %s837 = smul.addr %s836, 8
        %s838 = scalar_lea.vmem %s4, %s837
      $region48: #{upsample_pallas.1} parent=43 // pred_fallthru
        _
    $region44: #{upsample_pallas.1} parent=5 // pred_fallthru
      _
  $region6: #{upsample_pallas.1} parent=0 // loop_footer
    %s14 = sadd.s32 1, %s10
  $region7: #{upsample_pallas.1} parent=0 // loop_footer_branch
    %9 = sbr.rel target = $region3
  $region8: #{upsample_pallas.1} parent=0 // loop_exit
    _

</llo_original>
